<compile_context>
chip_gen: v6e
topology: v6e:2x2x1
jax: 0.10.0
libtpu: 0.0.40
codegen_flags: <defaults>
</compile_context>

<pallas_src>
import functools

import jax
import jax.numpy as jnp
from jax import lax
from jax.experimental import pallas as pl
from jax.experimental.pallas import tpu as pltpu


_MiB = 1024 * 1024
_STATS_CORE_SPLITS = 2   # leading "parallel" grid axis of pass 1 (v7x: 2 TCs;
                         # on 1-TC chips it just becomes 2 sequential shards)


def _round_up(x, m):
    return ((x + m - 1) // m) * m


def _tpu_vmem_bytes():
    try:
        return int(pltpu.get_tpu_info().vmem_capacity_bytes)
    except Exception:            # off-TPU tracing / interpret mode fallback
        return 128 * _MiB


def _pick_tile(n_rows, k, w, x_bytes):
    """Largest pillar tile that (a) fits comfortably in scoped VMEM when
    double-buffered, (b) still leaves >=4 grid steps when B allows (pipelining
    and megacore sharding need multiple steps)."""
    vmem_cap = _tpu_vmem_bytes()              # 64 MiB on v7x, 128 MiB on v5e/v6e
    vmem_limit = (vmem_cap * 3) // 4          # headroom for compiler scratch
    tile_budget = int(vmem_limit * 0.6)       # rest: weights, sems, misc
    bytes_per_row = 2 * (k * x_bytes + w * 4)  # double-buffered in + out tiles
    tb = tile_budget // max(bytes_per_row, 1)
    tb = min(tb, 16384)                                    # diminishing returns
    tb = min(tb, max(8, _round_up(-(-n_rows // 4), 8)))    # keep >=4 grid steps
    tb = max(8, (tb // 8) * 8)
    return tb, vmem_limit


def _stats_kernel(x_ref, w_ref, kref_ref, sum_ref, sumsq_ref, *,
                  tile_rows, inner_steps, n_valid_rows, mask_rows):
    """Pass 1: per-column shifted sums Sum(y-K) and Sum((y-K)^2), accumulated
    over this core-shard's pillar tiles into its own (8, Ws) output block."""

    @pl.when(pl.program_id(1) == 0)
    def _():
        sum_ref[...] = jnp.zeros_like(sum_ref)
        sumsq_ref[...] = jnp.zeros_like(sumsq_ref)

    x = x_ref[...].astype(jnp.bfloat16)                        # bf16 MXU path
    y = jnp.dot(x, w_ref[...], preferred_element_type=jnp.float32)  # (TB, Ws)
    d = y - kref_ref[...]              # shift ~= column mean -> stable variance

    if mask_rows:  # padded pillar rows must not contribute to batch statistics
        row0 = (pl.program_id(0) * inner_steps + pl.program_id(1)) * tile_rows
        row = row0 + lax.broadcasted_iota(jnp.int32, (tile_rows, 1), 0)
        d = jnp.where(row < n_valid_rows, d, 0.0)

    sum_ref[0:1, :] += jnp.sum(d, axis=0, keepdims=True)
    sumsq_ref[0:1, :] += jnp.sum(d * d, axis=0, keepdims=True)


def _apply_kernel(x_ref, w_ref, scale_ref, shift_ref, out_ref, *,
                  group, n_points, c_lin, last_vfe):
    """Pass 2: relu(bn(x @ W)), per-pillar max, lane-dense concat output."""
    x = x_ref[...].astype(jnp.bfloat16)
    y = jnp.dot(x, w_ref[...], preferred_element_type=jnp.float32)   # (TB, W)
    y = jnp.maximum(y * scale_ref[...] + shift_ref[...], 0.0)        # BN + ReLU

    # Per-channel max over the n_points lane-groups (stride = group) via an XLU
    # roll tree; afterwards every lane holds its channel's max, replicated
    # across all groups (exactly the broadcast the concat needs).
    m = y
    shift = group * (n_points // 2)
    while shift >= group:
        m = jnp.maximum(m, pltpu.roll(m, shift=shift, axis=1))
        shift //= 2

    if last_vfe:
        # (tb, Cl) store: lane width < 128 lowers to masked stores, but the
        # last-layer output volume is N x smaller than the input reads, so the
        # store slot never binds; padding to 128 lanes would only add HBM write
        # traffic to an HBM-bound kernel.
        out_ref[...] = m[:, :c_lin]                                  # (TB, Cl)
    else:
        # Lanes [g*group + c_lin, (g+1)*group) of y are exact zeros (zero weight
        # columns, zero scale/shift, ReLU>=0), and the per-channel max of those
        # zero lanes (in m) is 0.  Rolling m by c_lin drops each channel max
        # into the zero lanes and zeros into the y lanes, so one add yields the
        # interleaved [y | broadcast(max)] layout with no concat intermediate.
        out_ref[...] = y + pltpu.roll(m, shift=c_lin, axis=1)


def _build_block_weight(wt, n_points, group, c_lin):
    """Block-diagonal (N*Cin, N*group) weight applying wt to every point group."""
    cin = wt.shape[0]
    w_big = jnp.zeros((n_points * cin, n_points * group), wt.dtype)
    for g in range(n_points):
        w_big = w_big.at[g * cin:(g + 1) * cin,
                         g * group:g * group + c_lin].set(wt)
    return w_big


def pfn_layer_v2(inputs, weight, gamma, beta, *, eps=1e-3, last_vfe=False,
                 max_tile_b=None, interpret=False):
    """
    inputs: (B, N, Cin) f32 or bf16 dense pillars; weight: (Cl, Cin) nn.Linear
    weight (bias=False); gamma/beta: (Cl,) BatchNorm1d affine parameters.
    Returns (B, N, 2*Cl) f32 if not last_vfe, else (B, Cl) f32.
    """
    inputs = jnp.asarray(inputs)
    if inputs.dtype not in (jnp.float32, jnp.bfloat16):
        inputs = inputs.astype(jnp.float32)
    weight = jnp.asarray(weight, jnp.float32)
    gamma = jnp.asarray(gamma, jnp.float32)
    beta = jnp.asarray(beta, jnp.float32)

    B, N, Cin = inputs.shape
    Cl = weight.shape[0]
    assert N & (N - 1) == 0, "N (points per pillar) must be a power of two"

    group = Cl if last_vfe else 2 * Cl      # output lanes per point group
    K = N * Cin                             # GEMM contraction width (lane-dense)
    W = N * group                           # pass-2 GEMM / output lane width
    Ws = N * Cl                             # trimmed pass-1 width (no zero cols)

    # ---- pillar tiling (VMEM-capacity aware, padded so blocks are aligned) ----
    tb, vmem_limit = _pick_tile(B, K, W, inputs.dtype.itemsize)
    if max_tile_b is not None:
        tb = max(8, min(tb, (max_tile_b // 8) * 8))
    b_pad = _round_up(B, tb * _STATS_CORE_SPLITS)
    n_tiles = b_pad // tb
    inner = n_tiles // _STATS_CORE_SPLITS
    mask_rows = b_pad != B

    x2d = inputs.reshape(B, K)              # free row-major reshape
    if mask_rows:
        x2d = jnp.pad(x2d, ((0, b_pad - B), (0, 0)))

    wt = weight.T                                             # (Cin, Cl)
    w_stats_f32 = _build_block_weight(wt, N, Cl, Cl)          # (K, Ws), trimmed
    w_big_f32 = (w_stats_f32 if last_vfe
                 else _build_block_weight(wt, N, group, Cl))  # (K, W)
    w_stats = w_stats_f32.astype(jnp.bfloat16)
    w_big = w_big_f32.astype(jnp.bfloat16)

    # Cheap per-column shift reference (few rows, plain JAX) so pass 1 can sum
    # (y - K) instead of y -> no E[y^2]-mean^2 cancellation in the variance.
    ref_rows = min(B, 64)
    kref = jnp.mean(
        jnp.dot(x2d[:ref_rows].astype(jnp.float32), w_stats_f32,
                preferred_element_type=jnp.float32),
        axis=0, keepdims=True)                                # (1, Ws) f32

    # ---- pass 1: per-core partial shifted statistics over all pillar tiles ---
    acc_rows = _STATS_CORE_SPLITS * 8       # one 8-sublane block per core shard
    stats_kernel = functools.partial(
        _stats_kernel, tile_rows=tb, inner_steps=inner,
        n_valid_rows=B, mask_rows=mask_rows)
    col_sum, col_sumsq = pl.pallas_call(
        stats_kernel,
        out_shape=(jax.ShapeDtypeStruct((acc_rows, Ws), jnp.float32),
                   jax.ShapeDtypeStruct((acc_rows, Ws), jnp.float32)),
        grid_spec=pltpu.PrefetchScalarGridSpec(
            num_scalar_prefetch=0,
            grid=(_STATS_CORE_SPLITS, inner),
            in_specs=[
                pl.BlockSpec((tb, K), lambda c, i: (c * inner + i, 0)),
                pl.BlockSpec((K, Ws), lambda c, i: (0, 0)),   # resident constant
                pl.BlockSpec((1, Ws), lambda c, i: (0, 0)),   # shift reference
            ],
            out_specs=(pl.BlockSpec((8, Ws), lambda c, i: (c, 0)),
                       pl.BlockSpec((8, Ws), lambda c, i: (c, 0)))),
        compiler_params=pltpu.CompilerParams(
            dimension_semantics=("parallel", "arbitrary"),
            vmem_limit_bytes=vmem_limit),
        interpret=interpret,
    )(x2d, w_stats, kref)

    # ---- fold per-core/per-point partial stats -> per-channel scale/shift ----
    cnt = jnp.float32(B)                               # valid pillars per column
    s1 = jnp.sum(col_sum, axis=0)                      # (Ws,) merge cores+sublanes
    s2 = jnp.sum(col_sumsq, axis=0)
    mean_col = kref[0] + s1 / cnt                      # per-column mean
    m2_col = jnp.maximum(s2 - (s1 * s1) / cnt, 0.0)    # per-column Sum((y-mu)^2)
    mean_nc = mean_col.reshape(N, Cl)
    m2_nc = m2_col.reshape(N, Cl)
    mean = jnp.mean(mean_nc, axis=0)                   # (Cl,) grand mean
    m2 = (jnp.sum(m2_nc, axis=0)
          + cnt * jnp.sum(jnp.square(mean_nc - mean[None, :]), axis=0))
    var = jnp.maximum(m2 / (cnt * jnp.float32(N)), 0.0)   # biased var (train BN)
    scale = gamma * lax.rsqrt(var + eps)
    shift = beta - mean * scale

    pad = group - Cl                                   # zero lanes (non-last)
    scale_w = jnp.tile(jnp.concatenate([scale, jnp.zeros((pad,), jnp.float32)]), N)
    shift_w = jnp.tile(jnp.concatenate([shift, jnp.zeros((pad,), jnp.float32)]), N)
    scale_w = scale_w.reshape(1, W)
    shift_w = shift_w.reshape(1, W)

    # ---- pass 2: normalize + ReLU + per-pillar max + concat, lane-dense out ---
    apply_kernel = functools.partial(
        _apply_kernel, group=group, n_points=N, c_lin=Cl, last_vfe=last_vfe)
    out_w = Cl if last_vfe else W
    out = pl.pallas_call(
        apply_kernel,
        out_shape=jax.ShapeDtypeStruct((b_pad, out_w), jnp.float32),
        grid_spec=pltpu.PrefetchScalarGridSpec(
            num_scalar_prefetch=0,
            grid=(n_tiles,),
            in_specs=[pl.BlockSpec((tb, K), lambda i: (i, 0)),
                      pl.BlockSpec((K, W), lambda i: (0, 0)),
                      pl.BlockSpec((1, W), lambda i: (0, 0)),
                      pl.BlockSpec((1, W), lambda i: (0, 0))],
            out_specs=pl.BlockSpec((tb, out_w), lambda i: (i, 0))),
        compiler_params=pltpu.CompilerParams(
            dimension_semantics=("parallel",),        # megacore-shard pillar tiles
            vmem_limit_bytes=vmem_limit),
        interpret=interpret,
    )(x2d, w_big, scale_w, shift_w)

    if mask_rows:
        out = out[:B]
    if last_vfe:
        return out                                    # (B, Cl)
    return out.reshape(B, N, 2 * Cl)                  # free reshape of the slab


def _reference(inputs, weight, gamma, beta, *, eps=1e-3, last_vfe=False):
    """Pure-JAX reference mirroring the kernel's mixed precision (bf16 matmul
    inputs, f32 accumulation and f32 everywhere else)."""
    y = jnp.einsum("bnc,dc->bnd", inputs.astype(jnp.bfloat16),
                   weight.astype(jnp.bfloat16),
                   preferred_element_type=jnp.float32)
    mean = jnp.mean(y, axis=(0, 1), keepdims=True)
    var = jnp.mean(jnp.square(y - mean), axis=(0, 1), keepdims=True)
    y = ((y - mean) * lax.rsqrt(var + eps) * gamma.reshape(1, 1, -1)
         + beta.reshape(1, 1, -1))
    y = jnp.maximum(y, 0.0)
    y_max = jnp.max(y, axis=1, keepdims=True)
    if last_vfe:
        return y_max[:, 0, :]
    return jnp.concatenate([y, jnp.broadcast_to(y_max, y.shape)], axis=2)


if __name__ == "__main__":
    # PFNLayerV2(in_channels=16, out_channels=32, use_norm=True, last_layer=False)
    # -> internal linear out = 32 // 2 = 16, concatenated output = 32 channels.
    B, N, C_IN, C_OUT = 16, 8, 16, 32
    C_LIN = C_OUT // 2

    key = jax.random.PRNGKey(0)
    k_x, k_w = jax.random.split(key)
    # Offset the features so BN inputs have |mean| >> std, exercising the
    # shifted (cancellation-safe) variance path.
    x = jax.random.normal(k_x, (B, N, C_IN), dtype=jnp.float32) + 3.0
    weight = 0.1 * jax.random.normal(k_w, (C_LIN, C_IN), dtype=jnp.float32)
    gamma = 1.0 + 0.05 * jnp.arange(C_LIN, dtype=jnp.float32)
    beta = 0.01 * jnp.arange(C_LIN, dtype=jnp.float32)

    # Non-last layer, auto tile selection (tb=8 here): two pillar tiles ->
    # exercises the megacore-split stats grid, cross-tile stat accumulation and
    # the lane-dense concat output path.
    out = pfn_layer_v2(x, weight, gamma, beta, last_vfe=False)
    out = jax.block_until_ready(out)
    ref = _reference(x, weight, gamma, beta, last_vfe=False)
    assert out.shape == (B, N, C_OUT), out.shape
    assert jnp.allclose(out, ref, atol=1e-3, rtol=1e-3), \
        float(jnp.max(jnp.abs(out - ref)))

    # Last layer (full C_OUT linear, returns per-pillar max only, 2-D output).
    w_last = 0.1 * jax.random.normal(jax.random.PRNGKey(1), (C_OUT, C_IN),
                                     dtype=jnp.float32)
    g_last = jnp.ones((C_OUT,), jnp.float32)
    b_last = jnp.zeros((C_OUT,), jnp.float32)
    out_last = pfn_layer_v2(x, w_last, g_last, b_last, last_vfe=True, max_tile_b=8)
    out_last = jax.block_until_ready(out_last)
    ref_last = _reference(x, w_last, g_last, b_last, last_vfe=True)
    assert out_last.shape == (B, C_OUT), out_last.shape
    assert jnp.allclose(out_last, ref_last, atol=1e-3, rtol=1e-3)

    # Ragged pillar count: exercises padding + masked statistics + output slice.
    B2 = 13
    x2 = jax.random.normal(jax.random.PRNGKey(2), (B2, N, C_IN),
                           dtype=jnp.float32) + 3.0
    out2 = pfn_layer_v2(x2, weight, gamma, beta, last_vfe=False, max_tile_b=8)
    out2 = jax.block_until_ready(out2)
    ref2 = _reference(x2, weight, gamma, beta, last_vfe=False)
    assert out2.shape == (B2, N, C_OUT), out2.shape
    assert jnp.allclose(out2, ref2, atol=1e-3, rtol=1e-3)

    # bf16 pillar inputs accepted as-is (halves the dominant HBM read traffic).
    x_bf16 = x.astype(jnp.bfloat16)
    out_bf = pfn_layer_v2(x_bf16, weight, gamma, beta, last_vfe=False,
                          max_tile_b=8)
    out_bf = jax.block_until_ready(out_bf)
    ref_bf = _reference(x_bf16, weight, gamma, beta, last_vfe=False)
    assert out_bf.shape == (B, N, C_OUT), out_bf.shape
    assert jnp.allclose(out_bf, ref_bf, atol=2e-3, rtol=2e-3)

    print("KERNEL_OK")
</pallas_src>

<mosaic_0001>
module attributes {stable_mosaic.version = 11 : i64} {
  func.func @_stats_kernel(%arg0: i32, %arg1: i32, %arg2: memref<8x128xf32, #tpu.memory_space<vmem>>, %arg3: memref<128x128xbf16, #tpu.memory_space<vmem>>, %arg4: memref<1x128xf32, #tpu.memory_space<vmem>>, %arg5: memref<8x128xf32, #tpu.memory_space<vmem>>, %arg6: memref<8x128xf32, #tpu.memory_space<vmem>>) attributes {dimension_semantics = [#tpu.dimension_semantics<parallel>, #tpu.dimension_semantics<arbitrary>], iteration_bounds = array<i64: 2, 1>, scalar_prefetch = 0 : i64, scratch_operands = 0 : i64, tpu.core_type = #tpu.core_type<tc>, window_params = [{transform_indices = @transform_0, window_bounds = array<i64: 8, 128>}, {pipeline_mode = #tpu.pipeline_mode<synchronous>, transform_indices = @transform_1, window_bounds = array<i64: 128, 128>}, {pipeline_mode = #tpu.pipeline_mode<synchronous>, transform_indices = @transform_2, window_bounds = array<i64: 1, 128>}, {transform_indices = @transform_3, window_bounds = array<i64: 8, 128>}, {transform_indices = @transform_4, window_bounds = array<i64: 8, 128>}]} {
    %c0_i32 = arith.constant 0 : i32
    %0 = arith.cmpi eq, %arg1, %c0_i32 : i32
    %1 = arith.extui %0 : i1 to i32
    %c0_i32_0 = arith.constant 0 : i32
    %2 = arith.cmpi ne, %1, %c0_i32_0 : i32
    scf.if %2 {
      %cst_16 = arith.constant 0.000000e+00 : f32
      %21 = vector.broadcast %cst_16 : f32 to vector<8x128xf32>
      %c0_17 = arith.constant 0 : index
      %c0_18 = arith.constant 0 : index
      %22 = vector.load %arg5[%c0_17, %c0_18] : memref<8x128xf32, #tpu.memory_space<vmem>>, vector<8x128xf32>
      tpu.vector_store %arg5[%c0_17, %c0_18], %21 {strides = array<i32>} : memref<8x128xf32, #tpu.memory_space<vmem>>, vector<8x128xf32>,
      %cst_19 = arith.constant 0.000000e+00 : f32
      %23 = vector.broadcast %cst_19 : f32 to vector<8x128xf32>
      %c0_20 = arith.constant 0 : index
      %c0_21 = arith.constant 0 : index
      %24 = vector.load %arg6[%c0_20, %c0_21] : memref<8x128xf32, #tpu.memory_space<vmem>>, vector<8x128xf32>
      tpu.vector_store %arg6[%c0_20, %c0_21], %23 {strides = array<i32>} : memref<8x128xf32, #tpu.memory_space<vmem>>, vector<8x128xf32>,
    } else {
    }
    %c0 = arith.constant 0 : index
    %c0_1 = arith.constant 0 : index
    %3 = vector.load %arg2[%c0, %c0_1] : memref<8x128xf32, #tpu.memory_space<vmem>>, vector<8x128xf32>
    %4 = arith.truncf %3 : vector<8x128xf32> to vector<8x128xbf16>
    %c0_2 = arith.constant 0 : index
    %c0_3 = arith.constant 0 : index
    %5 = vector.load %arg3[%c0_2, %c0_3] : memref<128x128xbf16, #tpu.memory_space<vmem>>, vector<128x128xbf16>
    %cst = arith.constant dense<0.000000e+00> : vector<8x128xf32>
    %6 = tpu.matmul %4, %5, %cst {dimension_numbers = #tpu.dot_dimension_numbers<[1], [0], [0], [1], [0, 0, 1, 1], [], []>} : vector<8x128xbf16>, vector<128x128xbf16>, vector<8x128xf32> -> vector<8x128xf32>
    %c0_4 = arith.constant 0 : index
    %c0_5 = arith.constant 0 : index
    %7 = vector.load %arg4[%c0_4, %c0_5] : memref<1x128xf32, #tpu.memory_space<vmem>>, vector<1x128xf32>
    %8 = vector.broadcast %7 : vector<1x128xf32> to vector<8x128xf32>
    %9 = arith.subf %6, %8 : vector<8x128xf32>
    %c0_6 = arith.constant 0 : index
    %c0_7 = arith.constant 0 : index
    %10 = vector.load %arg5[%c0_6, %c0_7] : memref<8x128xf32, #tpu.memory_space<vmem>>, vector<1x128xf32>
    %cst_8 = arith.constant dense<0.000000e+00> : vector<128xf32>
    %11 = vector.multi_reduction <add>, %9, %cst_8 [0] : vector<8x128xf32> to vector<128xf32>
    %12 = vector.shape_cast %11 : vector<128xf32> to vector<1x128xf32>
    %13 = arith.addf %10, %12 : vector<1x128xf32>
    %c0_9 = arith.constant 0 : index
    %c0_10 = arith.constant 0 : index
    %14 = vector.load %arg5[%c0_9, %c0_10] : memref<8x128xf32, #tpu.memory_space<vmem>>, vector<1x128xf32>
    tpu.vector_store %arg5[%c0_9, %c0_10], %13 {strides = array<i32>} : memref<8x128xf32, #tpu.memory_space<vmem>>, vector<1x128xf32>,
    %c0_11 = arith.constant 0 : index
    %c0_12 = arith.constant 0 : index
    %15 = vector.load %arg6[%c0_11, %c0_12] : memref<8x128xf32, #tpu.memory_space<vmem>>, vector<1x128xf32>
    %16 = arith.mulf %9, %9 : vector<8x128xf32>
    %cst_13 = arith.constant dense<0.000000e+00> : vector<128xf32>
    %17 = vector.multi_reduction <add>, %16, %cst_13 [0] : vector<8x128xf32> to vector<128xf32>
    %18 = vector.shape_cast %17 : vector<128xf32> to vector<1x128xf32>
    %19 = arith.addf %15, %18 : vector<1x128xf32>
    %c0_14 = arith.constant 0 : index
    %c0_15 = arith.constant 0 : index
    %20 = vector.load %arg6[%c0_14, %c0_15] : memref<8x128xf32, #tpu.memory_space<vmem>>, vector<1x128xf32>
    tpu.vector_store %arg6[%c0_14, %c0_15], %19 {strides = array<i32>} : memref<8x128xf32, #tpu.memory_space<vmem>>, vector<1x128xf32>,
    return
  }
  func.func @transform_0(%arg0: i32, %arg1: i32) -> (i32, i32) {
    %c1_i32 = arith.constant 1 : i32
    %0 = arith.muli %arg0, %c1_i32 : i32
    %1 = arith.addi %0, %arg1 : i32
    %c0_i32 = arith.constant 0 : i32
    %c0_i32_0 = arith.constant 0 : i32
    return %1, %c0_i32 : i32, i32
  }
  func.func @transform_1(%arg0: i32, %arg1: i32) -> (i32, i32) {
    %c0_i32 = arith.constant 0 : i32
    %c0_i32_0 = arith.constant 0 : i32
    %c0_i32_1 = arith.constant 0 : i32
    return %c0_i32, %c0_i32_0 : i32, i32
  }
  func.func @transform_2(%arg0: i32, %arg1: i32) -> (i32, i32) {
    %c0_i32 = arith.constant 0 : i32
    %c0_i32_0 = arith.constant 0 : i32
    %c0_i32_1 = arith.constant 0 : i32
    return %c0_i32, %c0_i32_0 : i32, i32
  }
  func.func @transform_3(%arg0: i32, %arg1: i32) -> (i32, i32) {
    %c0_i32 = arith.constant 0 : i32
    %c0_i32_0 = arith.constant 0 : i32
    return %arg0, %c0_i32 : i32, i32
  }
  func.func @transform_4(%arg0: i32, %arg1: i32) -> (i32, i32) {
    %c0_i32 = arith.constant 0 : i32
    %c0_i32_0 = arith.constant 0 : i32
    return %arg0, %c0_i32 : i32, i32
  }
}

</mosaic_0001>

<llo_original>
// kernel: tpu_custom_call.1
$region0: #{tpu_custom_call.1}
  #allocation0 [shape = 'u32[]', space=smem, size = 0x4, offset = 0x4, fixed_abs, tag = 'smem constant byte address 0x4 - core index']
  #allocation1 [shape = 'u32[144,128]{1,0:T(1,128)}', space=vmem, size = 0x12000, scoped, tag = 'internal scratch']
  %s0 = inlined_call_operand.hbm [shape: f32[16,128], index: 0, kind: input, shape index: {}]
  %s1 = inlined_call_operand.hbm [shape: bf16[128,128], index: 1, kind: input, shape index: {}]
  %s2 = inlined_call_operand.vmem [shape: f32[1,128], index: 2, kind: input, shape index: {}]
  %s3 = inlined_call_operand.hbm [shape: f32[16,128], index: 3, kind: output, shape index: {0}]
  %s4 = inlined_call_operand.hbm [shape: f32[16,128], index: 4, kind: output, shape index: {1}]
  %5 = xla_tuple %s3, %s4
  %s6 = sld [smem:[#allocation0]]
  $region65: #{tpu_custom_call.1} parent=0
    _
  %s8 = ssub.s32 1, %s6
  %s9 = scalar_select 0, %s8, %s6
  $region1: #{tpu_custom_call.1} parent=0
    #allocation2 [shape = 'u8[8192]{0}', space=vmem, size = 0x2000, scoped, tag = 'input window, operand 0']
    #allocation3 [shape = 's32[2]{0}', space=sflag, size = 0x8, scoped, tag = 'scoped memory for tpu_custom_call.1']
    #allocation4 [shape = 's32[2]{0}', space=sflag, size = 0x8, scoped, tag = 'scoped memory for tpu_custom_call.1']
    #allocation5 [shape = 'u8[32768]{0}', space=vmem, size = 0x8000, scoped, tag = 'input window, operand 1, single buffered']
    #allocation6 [shape = 's32[1]{0}', space=sflag, size = 0x4, scoped, tag = 'scoped memory for tpu_custom_call.1']
    #allocation7 [shape = 'u8[8192]{0}', space=vmem, size = 0x2000, scoped, tag = 'output window, operand 0']
    #allocation8 [shape = 'u8[8192]{0}', space=vmem, size = 0x2000, scoped, tag = 'output window, operand 1']
    #allocation9 [shape = 's32[2]{0}', space=sflag, size = 0x8, scoped, tag = 'scoped memory for tpu_custom_call.1']
    %10 = vsyncpa [#allocation3], 0
    %s11 = scalar_lea.sflag [#allocation3], 1
    %12 = vsyncpa %s11, 0
    %13 = vsyncpa [#allocation6], 0
    %14 = vsyncpa [#allocation4], 0
    %s15 = scalar_lea.sflag [#allocation4], 1
    %16 = vsyncpa %s15, 0
    %17 = vsyncpa [#allocation9], 0
    %s18 = scalar_lea.sflag [#allocation9], 1
    %19 = vsyncpa %s18, 0
    loop: start=0, step=1, limit=4
    $region2: #{tpu_custom_call.1} parent=1 // loop_pre_header
      _
    $region3: #{tpu_custom_call.1} parent=1 // loop_header
      %s21 = sphi 0, %s25
      %p22 = scmp.ge.s32.totalorder %s21, 4
      %s28 = sphi 0, %s40
      %s29 = sphi 0, %s36
      %s30 = sphi 0, %s28
      %s31 = sphi 0, %s29
      %s32 = sphi 0, %s30
      %s33 = sphi 0, %s31
      %s45 = sphi 0, %s47
      %s48 = sphi 0, %s45
      %s49 = sphi 0, %s48
      %s65 = sphi 0, %s49
      %s69 = sphi 0, %s69
      %s71 = sphi 0, %s69
      %s72 = sphi 0, %s71
      %s86 = sphi 0, %s72
      %s90 = sphi 0, %s90
      %s92 = sphi 0, %s90
      %s93 = sphi 0, %s92
      %s107 = sphi 0, %s93
      %s113 = sphi 0, %s115
      %s116 = sphi 0, %s113
      %s117 = sphi 0, %s116
      %s133 = sphi 0, %s117
      %s139 = sphi 0, %s141
      %s142 = sphi 0, %s139
      %s143 = sphi 0, %s142
      %s159 = sphi 0, %s143
    $region4: #{tpu_custom_call.1} parent=1 // loop_header_branch
      %24 = sbr.rel (%p22) target = $region8
    $region5: #{tpu_custom_call.1} parent=1 // loop_body
      %s26 = ssub.s32 %s21, 1
      %s27 = ssub.s32 %s21, 2
      %s34 = sadd.s32 1, %s29
      %p35 = scmp.ge.s32.totalorder %s34, 1
      %s36 = scalar_select %p35, 0, %s34
      %s37 = sadd.s32 1, %s28
      %s38 = scalar_select %p35, %s37, %s28
      %p39 = scmp.ge.s32.totalorder %s38, 2
      %s40 = scalar_select %p39, 0, %s38
      %s41 = sadd.s32 %s28, %s29
      %s42 = sadd.s32 %s40, %s36
      %s43 = ssub.s32 %s41, %s42
      %p44 = scmp.eq.s32.totalorder %s43, 0
      %s46 = sadd.s32 %s45, 1
      %s47 = scalar_select %p44, %s45, %s46
      %p50 = pneg %p44
      %p51 = scmp.eq.s32.totalorder %s21, 1
      %p52 = por %p50, %p51
      %p53 = scmp.ne.s32.totalorder %s45, %s48
      %p54 = scmp.eq.s32.totalorder %s21, 0
      %p55 = por %p53, %p54
      %p56 = scmp.ne.s32.totalorder %s45, %s48
      %p57 = scmp.eq.s32.totalorder %s26, 1
      %p58 = por %p56, %p57
      %p59 = scmp.ne.s32.totalorder %s48, %s49
      %p60 = scmp.eq.s32.totalorder %s26, 0
      %p61 = por %p59, %p60
      %p62 = scmp.ne.s32.totalorder %s48, %s49
      %p63 = scmp.eq.s32.totalorder %s27, 1
      %p64 = por %p62, %p63
      %p66 = scmp.ne.s32.totalorder %s49, %s65
      %p67 = scmp.eq.s32.totalorder %s27, 0
      %p68 = por %p66, %p67
      %s70 = sadd.s32 %s69, 1
      %p73 = scmp.eq.s32.totalorder %s21, 1
      %p74 = scmp.ne.s32.totalorder %s69, %s71
      %p75 = scmp.eq.s32.totalorder %s21, 0
      %p76 = por %p74, %p75
      %p77 = scmp.ne.s32.totalorder %s69, %s71
      %p78 = scmp.eq.s32.totalorder %s26, 1
      %p79 = por %p77, %p78
      %p80 = scmp.ne.s32.totalorder %s71, %s72
      %p81 = scmp.eq.s32.totalorder %s26, 0
      %p82 = por %p80, %p81
      %p83 = scmp.ne.s32.totalorder %s71, %s72
      %p84 = scmp.eq.s32.totalorder %s27, 1
      %p85 = por %p83, %p84
      %p87 = scmp.ne.s32.totalorder %s72, %s86
      %p88 = scmp.eq.s32.totalorder %s27, 0
      %p89 = por %p87, %p88
      %s91 = sadd.s32 %s90, 1
      %p94 = scmp.eq.s32.totalorder %s21, 1
      %p95 = scmp.ne.s32.totalorder %s90, %s92
      %p96 = scmp.eq.s32.totalorder %s21, 0
      %p97 = por %p95, %p96
      %p98 = scmp.ne.s32.totalorder %s90, %s92
      %p99 = scmp.eq.s32.totalorder %s26, 1
      %p100 = por %p98, %p99
      %p101 = scmp.ne.s32.totalorder %s92, %s93
      %p102 = scmp.eq.s32.totalorder %s26, 0
      %p103 = por %p101, %p102
      %p104 = scmp.ne.s32.totalorder %s92, %s93
      %p105 = scmp.eq.s32.totalorder %s27, 1
      %p106 = por %p104, %p105
      %p108 = scmp.ne.s32.totalorder %s93, %s107
      %p109 = scmp.eq.s32.totalorder %s27, 0
      %p110 = por %p108, %p109
      %s111 = ssub.s32 %s28, %s40
      %p112 = scmp.eq.s32.totalorder %s111, 0
      %s114 = sadd.s32 %s113, 1
      %s115 = scalar_select %p112, %s113, %s114
      %p118 = pneg %p112
      %p119 = scmp.eq.s32.totalorder %s21, 1
      %p120 = por %p118, %p119
      %p121 = scmp.ne.s32.totalorder %s113, %s116
      %p122 = scmp.eq.s32.totalorder %s21, 0
      %p123 = por %p121, %p122
      %p124 = scmp.ne.s32.totalorder %s113, %s116
      %p125 = scmp.eq.s32.totalorder %s26, 1
      %p126 = por %p124, %p125
      %p127 = scmp.ne.s32.totalorder %s116, %s117
      %p128 = scmp.eq.s32.totalorder %s26, 0
      %p129 = por %p127, %p128
      %p130 = scmp.ne.s32.totalorder %s116, %s117
      %p131 = scmp.eq.s32.totalorder %s27, 1
      %p132 = por %p130, %p131
      %p134 = scmp.ne.s32.totalorder %s117, %s133
      %p135 = scmp.eq.s32.totalorder %s27, 0
      %p136 = por %p134, %p135
      %s137 = ssub.s32 %s28, %s40
      %p138 = scmp.eq.s32.totalorder %s137, 0
      %s140 = sadd.s32 %s139, 1
      %s141 = scalar_select %p138, %s139, %s140
      %p144 = pneg %p138
      %p145 = scmp.eq.s32.totalorder %s21, 1
      %p146 = por %p144, %p145
      %p147 = scmp.ne.s32.totalorder %s139, %s142
      %p148 = scmp.eq.s32.totalorder %s21, 0
      %p149 = por %p147, %p148
      %p150 = scmp.ne.s32.totalorder %s139, %s142
      %p151 = scmp.eq.s32.totalorder %s26, 1
      %p152 = por %p150, %p151
      %p153 = scmp.ne.s32.totalorder %s142, %s143
      %p154 = scmp.eq.s32.totalorder %s26, 0
      %p155 = por %p153, %p154
      %p156 = scmp.ne.s32.totalorder %s142, %s143
      %p157 = scmp.eq.s32.totalorder %s27, 1
      %p158 = por %p156, %p157
      %p160 = scmp.ne.s32.totalorder %s143, %s159
      %p161 = scmp.eq.s32.totalorder %s27, 0
      %p162 = por %p160, %p161
      %p163 = scmp.le.s32.totalorder 1, %s21
      %p164 = scmp.lt.s32.totalorder %s21, 3
      %p165 = pnand %p163, %p164
      %p166 = pneg %p165
      // Predicated region
      $region9: #{tpu_custom_call.1} parent=5 // pred_check
        _
      $region10: #{tpu_custom_call.1} parent=5 // pred_check_branch
        %168 = sbr.rel (%p165) target = $region12
      $region11: #{tpu_custom_call.1} parent=5 // pred_region
        %s169 = ssub.s32 %s21, 1
        // Predicated region
        $region13: #{tpu_custom_call.1} parent=11 // pred_check
          %p170 = pneg %p82
        $region14: #{tpu_custom_call.1} parent=11 // pred_check_branch
          %172 = sbr.rel (%p170) target = $region16
        $region15: #{tpu_custom_call.1} parent=11 // pred_region
          %s174 = ssub.s32 1024, 1024
          %175 = vsyncadd [#allocation6], %s174
          %s176 = sshll.u32 [#allocation5], 4
          %s177 = int_to_ptr.vmem [resolvable:$true] %s176
          %182 = dma.hbm_to_vmem [thread:$0]  %s1, 1024, %s177, [#allocation6], 64, 64, 4
        $region16: #{tpu_custom_call.1} parent=11 // pred_fallthru
          _
        // Predicated region
        $region17: #{tpu_custom_call.1} parent=11 // pred_check
          %p183 = pneg %p103
        $region18: #{tpu_custom_call.1} parent=11 // pred_check_branch
          %185 = sbr.rel (%p183) target = $region20
        $region19: #{tpu_custom_call.1} parent=11 // pred_region
          _
        $region20: #{tpu_custom_call.1} parent=11 // pred_fallthru
          _
      $region12: #{tpu_custom_call.1} parent=5 // pred_fallthru
        _
      %p186 = scmp.lt.s32.totalorder %s21, 2
      // Predicated region
      $region21: #{tpu_custom_call.1} parent=5 // pred_check
        %p187 = pneg %p186
      $region22: #{tpu_custom_call.1} parent=5 // pred_check_branch
        %189 = sbr.rel (%p187) target = $region24
      $region23: #{tpu_custom_call.1} parent=5 // pred_region
        // Predicated region
        $region25: #{tpu_custom_call.1} parent=23 // pred_check
          %p190 = pneg %p55
        $region26: #{tpu_custom_call.1} parent=23 // pred_check_branch
          %192 = sbr.rel (%p190) target = $region28
        $region27: #{tpu_custom_call.1} parent=23 // pred_region
          %s193 = sand.u32 %s45, 1
          %s194 = scalar_lea.sflag [#allocation3], %s193
          %s195 = sand.u32 %s45, 1
          %s196 = smul.addr %s195, 8
          %s197 = scalar_lea.vmem [#allocation2], %s196
          %s198 = sadd.s32 %s28, %s29
          %s200 = ssub.s32 128, 128
          %201 = vsyncadd %s194, %s200
          %s202 = smul.addr %s198, 128
          %s203 = scalar_lea.hbm %s0, %s202
          %s205 = sshll.u32 %s197, 4
          %s206 = int_to_ptr.vmem [resolvable:$true] %s205
          %208 = dma.hbm_to_vmem [thread:$0]  %s203, 128, %s206, %s194
        $region28: #{tpu_custom_call.1} parent=23 // pred_fallthru
          _
      $region24: #{tpu_custom_call.1} parent=5 // pred_fallthru
        _
      %p209 = scmp.le.s32.totalorder 1, %s21
      %p210 = scmp.lt.s32.totalorder %s21, 3
      %p211 = pnand %p209, %p210
      %p212 = pneg %p211
      // Predicated region
      $region29: #{tpu_custom_call.1} parent=5 // pred_check
        _
      $region30: #{tpu_custom_call.1} parent=5 // pred_check_branch
        %214 = sbr.rel (%p211) target = $region32
      $region31: #{tpu_custom_call.1} parent=5 // pred_region
        %s215 = ssub.s32 %s21, 1
        %s216 = sand.u32 %s48, 1
        %s217 = scalar_lea.sflag [#allocation3], %s216
        %s218 = sand.u32 %s48, 1
        %s219 = smul.addr %s218, 8
        %s220 = scalar_lea.vmem [#allocation2], %s219
        // Predicated region
        $region33: #{tpu_custom_call.1} parent=31 // pred_check
          %p221 = pneg %p61
        $region34: #{tpu_custom_call.1} parent=31 // pred_check_branch
          %223 = sbr.rel (%p221) target = $region36
        $region35: #{tpu_custom_call.1} parent=31 // pred_region
          %224 = dma.done %s217, 128
        $region36: #{tpu_custom_call.1} parent=31 // pred_fallthru
          _
        // Predicated region
        $region37: #{tpu_custom_call.1} parent=31 // pred_check
          %p225 = pneg %p82
        $region38: #{tpu_custom_call.1} parent=31 // pred_check_branch
          %227 = sbr.rel (%p225) target = $region40
        $region39: #{tpu_custom_call.1} parent=31 // pred_region
          %228 = dma.done [#allocation6], 1024
        $region40: #{tpu_custom_call.1} parent=31 // pred_fallthru
          _
        %s229 = sand.u32 %s48, 1
        %s230 = scalar_lea.sflag [#allocation3], %s229
        %s231 = sand.u32 %s48, 1
        %s232 = smul.addr %s231, 8
        %s233 = scalar_lea.vmem [#allocation2], %s232
        %p234 = pneg %p61
        %p235 = pneg %p58
        %p236 = pneg %p82
        %p237 = pneg %p79
        %p238 = pneg %p103
        %p239 = pneg %p100
        %p240 = pneg %p129
        %p241 = pneg %p126
        %s242 = sand.u32 %s116, 1
        %s243 = scalar_lea.sflag [#allocation4], %s242
        %s244 = sand.u32 %s116, 1
        %s245 = smul.addr %s244, 8
        %s246 = scalar_lea.vmem [#allocation7], %s245
        %p247 = pneg %p155
        %p248 = pneg %p152
        %s249 = sand.u32 %s142, 1
        %s250 = scalar_lea.sflag [#allocation9], %s249
        %s251 = sand.u32 %s142, 1
        %s252 = smul.addr %s251, 8
        %s253 = scalar_lea.vmem [#allocation8], %s252
        %s254 = sadd.s32 %s30, %s31
        %p256 = scmp.eq.s32.totalorder %s31, 0
        // Predicated region
        $region41: #{tpu_custom_call.1} parent=31 // pred_check
          %p257 = pneg %p256
        $region42: #{tpu_custom_call.1} parent=31 // pred_check_branch
          %259 = sbr.rel (%p257) target = $region44
        $region43: #{tpu_custom_call.1} parent=31 // pred_region
          %260 = vst [vmem:[%s246] sm:$0xff] 0.0
          %261 = vst [vmem:[%s253] sm:$0xff] 0.0
        $region44: #{tpu_custom_call.1} parent=31 // pred_fallthru
          _
        %v262 = vld [vmem:[%s220] sm:$0xff]
        %v263 = vpack.c.bf16 %v262, %v262
        %v264 = vld [vmem:[#allocation5] sm:$0xf]
        %v265 = vld [vmem:[#allocation5 + $0x4] sm:$0xf]
        %v266 = vld [vmem:[#allocation5 + $0x8] sm:$0xf]
        %v267 = vld [vmem:[#allocation5 + $0xc] sm:$0xf]
        %v268 = vld [vmem:[#allocation5 + $0x10] sm:$0xf]
        %v269 = vld [vmem:[#allocation5 + $0x14] sm:$0xf]
        %v270 = vld [vmem:[#allocation5 + $0x18] sm:$0xf]
        %v271 = vld [vmem:[#allocation5 + $0x1c] sm:$0xf]
        %v272 = vld [vmem:[#allocation5 + $0x20] sm:$0xf]
        %v273 = vld [vmem:[#allocation5 + $0x24] sm:$0xf]
        %v274 = vld [vmem:[#allocation5 + $0x28] sm:$0xf]
        %v275 = vld [vmem:[#allocation5 + $0x2c] sm:$0xf]
        %v276 = vld [vmem:[#allocation5 + $0x30] sm:$0xf]
        %v277 = vld [vmem:[#allocation5 + $0x34] sm:$0xf]
        %v278 = vld [vmem:[#allocation5 + $0x38] sm:$0xf]
        %v279 = vld [vmem:[#allocation5 + $0x3c] sm:$0xf]
        %v296 = vunpack.c.l.b16 %v264
        %v297 = vunpack.c.l.b16 %v265
        %v298 = vunpack.c.l.b16 %v266
        %v299 = vunpack.c.l.b16 %v267
        %v300 = vunpack.c.l.b16 %v268
        %v301 = vunpack.c.l.b16 %v269
        %v302 = vunpack.c.l.b16 %v270
        %v303 = vunpack.c.l.b16 %v271
        %v304 = vunpack.c.l.b16 %v272
        %v305 = vunpack.c.l.b16 %v273
        %v306 = vunpack.c.l.b16 %v274
        %v307 = vunpack.c.l.b16 %v275
        %v308 = vunpack.c.l.b16 %v276
        %v309 = vunpack.c.l.b16 %v277
        %v310 = vunpack.c.l.b16 %v278
        %v311 = vunpack.c.l.b16 %v279
        %v312 = vpack.c.b16 %v297, %v296
        %v313 = vpack.c.b16 %v299, %v298
        %v314 = vpack.c.b16 %v301, %v300
        %v315 = vpack.c.b16 %v303, %v302
        %v316 = vpack.c.b16 %v305, %v304
        %v317 = vpack.c.b16 %v307, %v306
        %v318 = vpack.c.b16 %v309, %v308
        %v319 = vpack.c.b16 %v311, %v310
        %328 = vmatprep.subr.bf16.mxu0 0
        %329 = vmatpush1.bf16.msra.mxu0 %v319
        %330 = vmatprep.subr.bf16.mxu0 0
        %331 = vmatpush1.bf16.msra.mxu0 %v318
        %332 = vmatprep.subr.bf16.mxu0 0
        %333 = vmatpush1.bf16.msra.mxu0 %v317
        %334 = vmatprep.subr.bf16.mxu0 0
        %335 = vmatpush1.bf16.msra.mxu0 %v316
        %336 = vmatprep.subr.bf16.mxu0 0
        %337 = vmatpush1.bf16.msra.mxu0 %v315
        %338 = vmatprep.subr.bf16.mxu0 0
        %339 = vmatpush1.bf16.msra.mxu0 %v314
        %340 = vmatprep.subr.bf16.mxu0 0
        %341 = vmatpush1.bf16.msra.mxu0 %v313
        %342 = vmatprep.subr.bf16.mxu0 0
        %343 = vmatpush1.bf16.msra.mxu0 %v312
        %344 = vmatprep.subr.bf16.mxu0 0
        %345 = vmatpush2.bf16.msra.mxu0 0
        %346 = vmatprep.subr.bf16.mxu0 0
        %347 = vmatpush2.bf16.msra.mxu0 0
        %348 = vmatprep.subr.bf16.mxu0 0
        %349 = vmatpush2.bf16.msra.mxu0 0
        %350 = vmatprep.subr.bf16.mxu0 0
        %351 = vmatpush2.bf16.msra.mxu0 0
        %352 = vmatprep.subr.bf16.mxu0 0
        %353 = vmatpush2.bf16.msra.mxu0 0
        %354 = vmatprep.subr.bf16.mxu0 0
        %355 = vmatpush2.bf16.msra.mxu0 0
        %356 = vmatprep.subr.bf16.mxu0 0
        %357 = vmatpush2.bf16.msra.mxu0 0
        %358 = vmatprep.subr.bf16.mxu0 0
        %359 = vmatpush2.bf16.msra.mxu0 0
        %360 = vmatprep.mubr.bf16.mxu0 0
        %361 = vmatmul.mubr.bf16.gmra.mxu0 %v263
        %v362 = vpop.f32.mrf.mxu0
        %v363 = vadd.f32 0.0, %v362
        %v364 = vpop.f32.mrf.mxu0
        %v365 = vpop.f32.mrf.mxu0
        %v366 = vpop.f32.mrf.mxu0
        %367 = vdwg.mxu0
        %v368 = vld [vmem:[%s2] sm:$0x1]
        %v370 = vlaneseq
        %v371 = vshrl.u32 %v370, 7
        %v372 = vsub.s32 0, %v371
        %v373 = vrot.slane %v368, %v372
        %v375 = vsub.f32 %v363, %v373
        %v376 = vld [vmem:[%s246] sm:$0x1]
        %v377 = vrot.slane %v375, 4
        %v378 = vadd.f32 %v375, %v377
        %v379 = vrot.slane %v378, 2
        %v380 = vadd.f32 %v378, %v379
        %v381 = vrot.slane %v380, 1
        %v382 = vadd.f32 %v380, %v381
        %v383 = vadd.f32 %v376, %v382
        %384 = vst [vmem:[%s246] sm:$0x1] %v383
        %v385 = vld [vmem:[%s253] sm:$0x1]
        %v386 = vmul.f32 %v375, %v375
        %v387 = vrot.slane %v386, 4
        %v388 = vadd.f32 %v386, %v387
        %v389 = vrot.slane %v388, 2
        %v390 = vadd.f32 %v388, %v389
        %v391 = vrot.slane %v390, 1
        %v392 = vadd.f32 %v390, %v391
        %v393 = vadd.f32 %v385, %v392
        %394 = vst [vmem:[%s253] sm:$0x1] %v393
        %s395 = sand.u32 %s116, 1
        %s396 = scalar_lea.sflag [#allocation4], %s395
        %s397 = sand.u32 %s116, 1
        %s398 = smul.addr %s397, 8
        %s399 = scalar_lea.vmem [#allocation7], %s398
        %s400 = sand.u32 %s142, 1
        %s401 = scalar_lea.sflag [#allocation9], %s400
        %s402 = sand.u32 %s142, 1
        %s403 = smul.addr %s402, 8
        %s404 = scalar_lea.vmem [#allocation8], %s403
        // Predicated region
        $region45: #{tpu_custom_call.1} parent=31 // pred_check
          %p405 = pneg %p126
        $region46: #{tpu_custom_call.1} parent=31 // pred_check_branch
          %407 = sbr.rel (%p405) target = $region48
        $region47: #{tpu_custom_call.1} parent=31 // pred_region
          %s409 = ssub.s32 128, 128
          %410 = vsyncadd %s396, %s409
          %s411 = smul.addr %s30, 128
          %s412 = scalar_lea.hbm %s3, %s411
          %s414 = sshll.u32 %s399, 4
          %s415 = int_to_ptr.vmem [resolvable:$true] %s414
          %417 = dma.vmem_to_hbm [thread:$0]  %s415, 128, %s412, %s396
        $region48: #{tpu_custom_call.1} parent=31 // pred_fallthru
          _
        // Predicated region
        $region49: #{tpu_custom_call.1} parent=31 // pred_check
          %p418 = pneg %p152
        $region50: #{tpu_custom_call.1} parent=31 // pred_check_branch
          %420 = sbr.rel (%p418) target = $region52
        $region51: #{tpu_custom_call.1} parent=31 // pred_region
          %s422 = ssub.s32 128, 128
          %423 = vsyncadd %s401, %s422
          %s424 = smul.addr %s30, 128
          %s425 = scalar_lea.hbm %s4, %s424
          %s427 = sshll.u32 %s404, 4
          %s428 = int_to_ptr.vmem [resolvable:$true] %s427
          %430 = dma.vmem_to_hbm [thread:$0]  %s428, 128, %s425, %s401
        $region52: #{tpu_custom_call.1} parent=31 // pred_fallthru
          _
      $region32: #{tpu_custom_call.1} parent=5 // pred_fallthru
        _
      %p431 = scmp.le.s32.totalorder 2, %s21
      // Predicated region
      $region53: #{tpu_custom_call.1} parent=5 // pred_check
        %p432 = pneg %p431
      $region54: #{tpu_custom_call.1} parent=5 // pred_check_branch
        %434 = sbr.rel (%p432) target = $region56
      $region55: #{tpu_custom_call.1} parent=5 // pred_region
        %s435 = ssub.s32 %s21, 2
        // Predicated region
        $region57: #{tpu_custom_call.1} parent=55 // pred_check
          %p436 = pneg %p132
        $region58: #{tpu_custom_call.1} parent=55 // pred_check_branch
          %438 = sbr.rel (%p436) target = $region60
        $region59: #{tpu_custom_call.1} parent=55 // pred_region
          %s439 = sand.u32 %s117, 1
          %s440 = scalar_lea.sflag [#allocation4], %s439
          %s441 = sand.u32 %s117, 1
          %s442 = smul.addr %s441, 8
          %s443 = scalar_lea.vmem [#allocation7], %s442
          %444 = dma.done %s440, 128
        $region60: #{tpu_custom_call.1} parent=55 // pred_fallthru
          _
        // Predicated region
        $region61: #{tpu_custom_call.1} parent=55 // pred_check
          %p445 = pneg %p158
        $region62: #{tpu_custom_call.1} parent=55 // pred_check_branch
          %447 = sbr.rel (%p445) target = $region64
        $region63: #{tpu_custom_call.1} parent=55 // pred_region
          %s448 = sand.u32 %s143, 1
          %s449 = scalar_lea.sflag [#allocation9], %s448
          %s450 = sand.u32 %s143, 1
          %s451 = smul.addr %s450, 8
          %s452 = scalar_lea.vmem [#allocation8], %s451
          %453 = dma.done %s449, 128
        $region64: #{tpu_custom_call.1} parent=55 // pred_fallthru
          _
      $region56: #{tpu_custom_call.1} parent=5 // pred_fallthru
        _
    $region6: #{tpu_custom_call.1} parent=1 // loop_footer
      %s25 = sadd.s32 1, %s21
    $region7: #{tpu_custom_call.1} parent=1 // loop_footer_branch
      %20 = sbr.rel target = $region3
    $region8: #{tpu_custom_call.1} parent=1 // loop_exit
      _
    %454 = vsyncpa [#allocation3], 1
    %s455 = scalar_lea.sflag [#allocation3], 1
    %456 = vsyncpa %s455, 1
    %457 = vsyncpa [#allocation6], 1
    %458 = vsyncpa [#allocation4], 1
    %s459 = scalar_lea.sflag [#allocation4], 1
    %460 = vsyncpa %s459, 1
    %461 = vsyncpa [#allocation9], 1
    %s462 = scalar_lea.sflag [#allocation9], 1
    %463 = vsyncpa %s462, 1

</llo_original>
